<compile_context>
chip_gen: v7x
topology: tpu7x:2x2x1
jax: 0.10.0
libtpu: 0.0.40
codegen_flags: <defaults>
</compile_context>

<pallas_src>
import jax
import jax.numpy as jnp
from jax.experimental import pallas as pl
from jax.experimental.pallas import tpu as pltpu


_LANE = 128
_SUBLANE = 8
_DOT_DTYPE = jnp.bfloat16        # MXU operand dtype (f32 accumulation below)
_SINGLE_TILE_MAX_ROWS = 512      # below this: whole arrays in VMEM, no grid
_MAX_BLOCK_B = 4096              # ~11 MiB double-buffered f32 per grid step


def _round_up(n, m):
    return ((n + m - 1) // m) * m


def _add_linear_relu_kernel(x_ref, y_ref, w_ref, b_ref, o_ref):
    # Fused: add (f32, VPU) -> matmul (bf16 operands, f32 acc on MXU)
    #        -> bias add -> relu, all in VMEM.  K=100 / N=10 lane padding is
    #        handled by Mosaic inside the dot; no host-side pad needed.
    z = x_ref[...] + y_ref[...]                                    # [tb, IN] f32
    acc = jnp.dot(z.astype(_DOT_DTYPE), w_ref[...],
                  preferred_element_type=jnp.float32)              # [tb, N] f32
    acc = acc + b_ref[...]                                         # broadcast [1, N]
    o_ref[...] = jnp.maximum(acc, 0.0).astype(o_ref.dtype)


@jax.jit
def my_module_forward(x, y, w, b):
    """relu((x + y) @ w.T + b)   (== MyModule.forward)

    x, y : [B, IN]   float32
    w    : [OUT, IN] float32   (torch.nn.Linear layout)
    b    : [OUT]     float32
    returns [B, OUT] float32
    """
    B, IN = x.shape
    OUT = w.shape[0]

    w_t = jnp.transpose(w).astype(_DOT_DTYPE)     # [IN, OUT] bf16 MXU operand
    b2 = b.reshape(1, OUT)                        # [1, OUT] f32

    if B <= _SINGLE_TILE_MAX_ROWS:
        # ---- Single-tile path: whole arrays in VMEM, no grid / pipeline. ----
        # Keep the output lane-dense (OUT 10 -> 128) so stores are unmasked;
        # the tiny wrapper slice is negligible at this size.
        out_pad = _round_up(OUT, _LANE)
        w_t_pad = jnp.pad(w_t, ((0, 0), (0, out_pad - OUT)))
        b_pad = jnp.pad(b2, ((0, 0), (0, out_pad - OUT)))
        vmem = pl.BlockSpec(memory_space=pltpu.MemorySpace.VMEM)
        out_full = pl.pallas_call(
            _add_linear_relu_kernel,
            out_shape=jax.ShapeDtypeStruct((B, out_pad), x.dtype),
            in_specs=[vmem, vmem, vmem, vmem],
            out_specs=vmem,
        )(x, y, w_t_pad, b_pad)
        return out_full[:, :OUT]

    # ---- Batch-tiled path (HBM-bandwidth bound). ----
    # Tile chosen so the grid has >= 4 steps (v7x: 2 TCs) but capped so
    # double-buffered f32 tiles stay well inside scoped VMEM on every chip.
    tb = min(_MAX_BLOCK_B, max(_SUBLANE, _round_up(pl.cdiv(B, 4), _SUBLANE)))
    grid = pl.cdiv(B, tb)

    return pl.pallas_call(
        _add_linear_relu_kernel,
        out_shape=jax.ShapeDtypeStruct((B, OUT), x.dtype),
        grid=(grid,),
        in_specs=[
            pl.BlockSpec((tb, IN), lambda i: (i, 0)),     # unpadded inputs
            pl.BlockSpec((tb, IN), lambda i: (i, 0)),
            pl.BlockSpec((IN, OUT), lambda i: (0, 0)),    # VMEM-resident weight
            pl.BlockSpec((1, OUT), lambda i: (0, 0)),     # VMEM-resident bias
        ],
        out_specs=pl.BlockSpec((tb, OUT), lambda i: (i, 0)),  # exact-shape output
        compiler_params=pltpu.CompilerParams(
            dimension_semantics=("parallel",),   # shard batch across v7x's 2 TCs
            vmem_limit_bytes=32 * 1024 * 1024),
    )(x, y, w_t, b2)


if __name__ == "__main__":
    IN_FEATURES = 100
    OUT_FEATURES = 10

    key = jax.random.PRNGKey(0)
    kx, ky, kw, kb, kx2, ky2 = jax.random.split(key, 6)

    # Parameter init mimicking torch.nn.Linear default:
    # uniform(-1/sqrt(in), 1/sqrt(in)) for weight and bias.
    bound = 1.0 / (IN_FEATURES ** 0.5)
    w = jax.random.uniform(kw, (OUT_FEATURES, IN_FEATURES), jnp.float32,
                           minval=-bound, maxval=bound)   # torch layout [out, in]
    b = jax.random.uniform(kb, (OUT_FEATURES,), jnp.float32,
                           minval=-bound, maxval=bound)

    def ref_fn(x, y):
        # Same math as torch: relu((x + y) @ W.T + b), computed in f32.
        return jnp.maximum((x + y) @ w.T + b, 0.0)

    ok = True

    # ---- small-batch / single-tile path (matches the tutorial's shapes) ----
    BATCH = 8
    x = jax.random.normal(kx, (BATCH, IN_FEATURES), jnp.float32)
    y = jax.random.normal(ky, (BATCH, IN_FEATURES), jnp.float32)
    out = jax.block_until_ready(my_module_forward(x, y, w, b))
    ref = ref_fn(x, y)
    ok &= out.shape == (BATCH, OUT_FEATURES)
    # Tolerance loosened because the kernel uses bf16 MXU operands (f32 acc).
    ok &= bool(jnp.allclose(out, ref, atol=5e-2, rtol=5e-2))

    # ---- batch-tiled path (exercises grid, ragged last block, exact-OUT out) ----
    BATCH2 = 1000   # > _SINGLE_TILE_MAX_ROWS, not a multiple of the tile
    x2 = jax.random.normal(kx2, (BATCH2, IN_FEATURES), jnp.float32)
    y2 = jax.random.normal(ky2, (BATCH2, IN_FEATURES), jnp.float32)
    out2 = jax.block_until_ready(my_module_forward(x2, y2, w, b))
    ref2 = ref_fn(x2, y2)
    ok &= out2.shape == (BATCH2, OUT_FEATURES)
    ok &= bool(jnp.allclose(out2, ref2, atol=5e-2, rtol=5e-2))

    assert ok, (float(jnp.max(jnp.abs(out - ref))),
                float(jnp.max(jnp.abs(out2 - ref2))))
    print("KERNEL_OK")
</pallas_src>

<mosaic_0001>
module attributes {stable_mosaic.version = 11 : i64} {
  func.func @_add_linear_relu_kernel(%arg0: memref<8x100xf32, #tpu.memory_space<vmem>>, %arg1: memref<8x100xf32, #tpu.memory_space<vmem>>, %arg2: memref<100x128xbf16, #tpu.memory_space<vmem>>, %arg3: memref<1x128xf32, #tpu.memory_space<vmem>>, %arg4: memref<8x128xf32, #tpu.memory_space<vmem>>) attributes {dimension_semantics = [], scalar_prefetch = 0 : i64, scratch_operands = 0 : i64, tpu.core_type = #tpu.core_type<tc>} {
    %c0 = arith.constant 0 : index
    %c0_0 = arith.constant 0 : index
    %0 = vector.load %arg0[%c0, %c0_0] : memref<8x100xf32, #tpu.memory_space<vmem>>, vector<8x100xf32>
    %c0_1 = arith.constant 0 : index
    %c0_2 = arith.constant 0 : index
    %1 = vector.load %arg1[%c0_1, %c0_2] : memref<8x100xf32, #tpu.memory_space<vmem>>, vector<8x100xf32>
    %2 = arith.addf %0, %1 : vector<8x100xf32>
    %3 = arith.truncf %2 : vector<8x100xf32> to vector<8x100xbf16>
    %c0_3 = arith.constant 0 : index
    %c0_4 = arith.constant 0 : index
    %4 = vector.load %arg2[%c0_3, %c0_4] : memref<100x128xbf16, #tpu.memory_space<vmem>>, vector<100x128xbf16>
    %cst = arith.constant dense<0.000000e+00> : vector<8x128xf32>
    %5 = tpu.matmul %3, %4, %cst {dimension_numbers = #tpu.dot_dimension_numbers<[1], [0], [0], [1], [0, 0, 1, 1], [], []>} : vector<8x100xbf16>, vector<100x128xbf16>, vector<8x128xf32> -> vector<8x128xf32>
    %c0_5 = arith.constant 0 : index
    %c0_6 = arith.constant 0 : index
    %6 = vector.load %arg3[%c0_5, %c0_6] : memref<1x128xf32, #tpu.memory_space<vmem>>, vector<1x128xf32>
    %7 = vector.broadcast %6 : vector<1x128xf32> to vector<8x128xf32>
    %8 = arith.addf %5, %7 : vector<8x128xf32>
    %cst_7 = arith.constant 0.000000e+00 : f32
    %9 = vector.broadcast %cst_7 : f32 to vector<8x128xf32>
    %10 = arith.maximumf %8, %9 : vector<8x128xf32>
    %c0_8 = arith.constant 0 : index
    %c0_9 = arith.constant 0 : index
    %11 = vector.load %arg4[%c0_8, %c0_9] : memref<8x128xf32, #tpu.memory_space<vmem>>, vector<8x128xf32>
    tpu.vector_store %arg4[%c0_8, %c0_9], %10 {strides = array<i32>} : memref<8x128xf32, #tpu.memory_space<vmem>>, vector<8x128xf32>,
    return
  }
}

</mosaic_0001>

<llo_original>
// kernel: my_module_forward.1
$region0: #{my_module_forward.1}
  #allocation0 [shape = 'u32[]', space=smem, size = 0x4, offset = 0x4, fixed_abs, tag = 'smem constant byte address 0x4 - core index']
  #allocation1 [shape = 'u32[144,128]{1,0:T(1,128)}', space=vmem, size = 0x12000, scoped, tag = 'internal scratch']
  %s0 = inlined_call_operand.vmem [shape: f32[8,100], index: 0, kind: input, shape index: {}]
  %s1 = inlined_call_operand.vmem [shape: f32[8,100], index: 1, kind: input, shape index: {}]
  %s2 = inlined_call_operand.vmem [shape: bf16[100,128], index: 2, kind: input, shape index: {}]
  %s3 = inlined_call_operand.vmem [shape: f32[1,128], index: 3, kind: input, shape index: {}]
  %s4 = inlined_call_operand.hbm [shape: f32[8,128], index: 4, kind: output, shape index: {}]
  %s5 = sld [smem:[#allocation0]]
  $region26: #{my_module_forward.1} parent=0
    _
  %s7 = ssub.s32 1, %s5
  %s8 = scalar_select 0, %s7, %s5
  $region1: #{my_module_forward.1} parent=0
    #allocation2 [shape = 'u8[4096]{0}', space=vmem, size = 0x1000, scoped, tag = 'output window, operand 0, single buffered']
    #allocation3 [shape = 's32[1]{0}', space=sflag, size = 0x4, scoped, tag = 'scoped memory for my_module_forward.1']
    %9 = vsyncpa [#allocation3], 0
    // Predicated region
    $region2: #{my_module_forward.1} parent=1 // pred_check
      _
    $region3: #{my_module_forward.1} parent=1 // pred_check_branch
      %11 = sbr.rel (0) target = $region5
    $region4: #{my_module_forward.1} parent=1 // pred_region
      _
    $region5: #{my_module_forward.1} parent=1 // pred_fallthru
      _
    // Predicated region
    $region6: #{my_module_forward.1} parent=1 // pred_check
      _
    $region7: #{my_module_forward.1} parent=1 // pred_check_branch
      %13 = sbr.rel (0) target = $region9
    $region8: #{my_module_forward.1} parent=1 // pred_region
      _
    $region9: #{my_module_forward.1} parent=1 // pred_fallthru
      _
    // Predicated region
    $region10: #{my_module_forward.1} parent=1 // pred_check
      _
    $region11: #{my_module_forward.1} parent=1 // pred_check_branch
      %15 = sbr.rel (0) target = $region13
    $region12: #{my_module_forward.1} parent=1 // pred_region
      _
    $region13: #{my_module_forward.1} parent=1 // pred_fallthru
      _
    // Predicated region
    $region14: #{my_module_forward.1} parent=1 // pred_check
      _
    $region15: #{my_module_forward.1} parent=1 // pred_check_branch
      %17 = sbr.rel (0) target = $region17
    $region16: #{my_module_forward.1} parent=1 // pred_region
      _
    $region17: #{my_module_forward.1} parent=1 // pred_fallthru
      _
    %v19 = vld [vmem:[%s0] sm:$0xff]
    %v20 = vld [vmem:[%s1] sm:$0xff]
    %v21 = vadd.f32 %v19, %v20
    %v22 = vpack.c.bf16 %v21, %v21
    %v23 = vld [vmem:[%s2] sm:$0xf]
    %v24 = vld [vmem:[%s2 + $0x4] sm:$0xf]
    %v25 = vld [vmem:[%s2 + $0x8] sm:$0xf]
    %v26 = vld [vmem:[%s2 + $0xc] sm:$0xf]
    %v27 = vld [vmem:[%s2 + $0x10] sm:$0xf]
    %v28 = vld [vmem:[%s2 + $0x14] sm:$0xf]
    %v29 = vld [vmem:[%s2 + $0x18] sm:$0xf]
    %v30 = vld [vmem:[%s2 + $0x1c] sm:$0xf]
    %v31 = vld [vmem:[%s2 + $0x20] sm:$0xf]
    %v32 = vld [vmem:[%s2 + $0x24] sm:$0xf]
    %v33 = vld [vmem:[%s2 + $0x28] sm:$0xf]
    %v34 = vld [vmem:[%s2 + $0x2c] sm:$0xf]
    %v35 = vld [vmem:[%s2 + $0x30] sm:$0x3]
    %v36 = vld [vmem:[%s3] sm:$0x1]
    %v38 = vlaneseq
    %v39 = vshrl.u32 %v38, 7
    %v40 = vsub.s32 0, %v39
    %v41 = vrot.slane %v36, %v40
    %v56 = vunpack.c.l.b16 %v23
    %v57 = vunpack.c.l.b16 %v24
    %v58 = vunpack.c.l.b16 %v25
    %v59 = vunpack.c.l.b16 %v26
    %v60 = vunpack.c.l.b16 %v27
    %v61 = vunpack.c.l.b16 %v28
    %v62 = vunpack.c.l.b16 %v29
    %v63 = vunpack.c.l.b16 %v30
    %v64 = vunpack.c.l.b16 %v31
    %v65 = vunpack.c.l.b16 %v32
    %v66 = vunpack.c.l.b16 %v33
    %v67 = vunpack.c.l.b16 %v34
    %v68 = vunpack.c.l.b16 %v35
    %v69 = vpack.c.b16 %v57, %v56
    %v70 = vpack.c.b16 %v59, %v58
    %v71 = vpack.c.b16 %v61, %v60
    %v72 = vpack.c.b16 %v63, %v62
    %v73 = vpack.c.b16 %v65, %v64
    %v74 = vpack.c.b16 %v67, %v66
    %v75 = vpack.c.b16 %v68, %v68
    %vm82 = vcmask 818176
    %v84 = vsel %vm82, %v22, 0
    %vm86 = vcmask 1041408
    %v88 = vsel %vm86, %v75, 0
    %90 = vmatprep.subr.bf16.mxu0 0
    %91 = vmatpush1.bf16.msra.mxu0 %v69
    %92 = vmatprep.subr.bf16.mxu0 0
    %93 = vmatpush1.bf16.msra.mxu0 %v70
    %94 = vmatprep.subr.bf16.mxu0 0
    %95 = vmatpush1.bf16.msra.mxu0 %v71
    %96 = vmatprep.subr.bf16.mxu0 0
    %97 = vmatpush1.bf16.msra.mxu0 %v72
    %98 = vmatprep.subr.bf16.mxu0 0
    %99 = vmatpush1.bf16.msra.mxu0 %v73
    %100 = vmatprep.subr.bf16.mxu0 0
    %101 = vmatpush1.bf16.msra.mxu0 %v74
    %102 = vmatprep.subr.bf16.mxu0 0
    %103 = vmatpush1.bf16.msra.mxu0 %v88
    %104 = vmatprep.subr.bf16.mxu0 0
    %105 = vmatpush1.bf16.msra.mxu0 0
    %106 = vmatprep.subr.bf16.mxu0 0
    %107 = vmatpush1.bf16.msra.mxu0 0
    %108 = vmatprep.subr.bf16.mxu0 0
    %109 = vmatpush1.bf16.msra.mxu0 0
    %110 = vmatprep.subr.bf16.mxu0 0
    %111 = vmatpush1.bf16.msra.mxu0 0
    %112 = vmatprep.subr.bf16.mxu0 0
    %113 = vmatpush1.bf16.msra.mxu0 0
    %114 = vmatprep.subr.bf16.mxu0 0
    %115 = vmatpush1.bf16.msra.mxu0 0
    %116 = vmatprep.subr.bf16.mxu0 0
    %117 = vmatpush1.bf16.msra.mxu0 0
    %118 = vmatprep.subr.bf16.mxu0 0
    %119 = vmatpush1.bf16.msra.mxu0 0
    %120 = vmatprep.subr.bf16.mxu0 0
    %121 = vmatpush1.bf16.msra.mxu0 0
    %122 = vmatprep.mubr.bf16.mxu0 0
    %123 = vmatmul.mubr.bf16.gmra.mrb[0].mxu0 %v84
    %v124 = vpop.f32.mrb[0].mxu0
    %v125 = vadd.f32 %v41, %v124
    %v126 = vpop.f32.mrb[0].mxu0
    %v127 = vpop.f32.mrb[0].mxu0
    %v128 = vpop.f32.mrb[0].mxu0
    %129 = vdwg.mxu0
    %v130 = vmax.f32 %v125, 0.0
    %131 = vst [vmem:[#allocation2] sm:$0xff] %v130
    // Predicated region
    $region18: #{my_module_forward.1} parent=1 // pred_check
      _
    $region19: #{my_module_forward.1} parent=1 // pred_check_branch
      %133 = sbr.rel (0) target = $region21
    $region20: #{my_module_forward.1} parent=1 // pred_region
      %s135 = ssub.s32 128, 128
      %136 = vsyncadd [#allocation3], %s135
      %s138 = sshll.u32 [#allocation2], 4
      %s139 = int_to_ptr.vmem [resolvable:$true] %s138
      %141 = dma.vmem_to_hbm [thread:$0]  %s139, 128, %s4, [#allocation3]
    $region21: #{my_module_forward.1} parent=1 // pred_fallthru
      _
    // Predicated region
    $region22: #{my_module_forward.1} parent=1 // pred_check
      _
    $region23: #{my_module_forward.1} parent=1 // pred_check_branch
      %143 = sbr.rel (0) target = $region25
    $region24: #{my_module_forward.1} parent=1 // pred_region
      %144 = dma.done [#allocation3], 128
    $region25: #{my_module_forward.1} parent=1 // pred_fallthru
      _
    %145 = vsyncpa [#allocation3], 1

</llo_original>
